<compile_context>
chip_gen: v5e
topology: v5e:2x2
jax: 0.10.0
libtpu: 0.0.40
codegen_flags: <defaults>
</compile_context>

<pallas_src>
import functools

import jax
import jax.numpy as jnp
from jax import lax
from jax.experimental import pallas as pl
from jax.experimental.pallas import tpu as pltpu


def _round_up(x, m):
    return ((x + m - 1) // m) * m


def gru_recurrent_kernel(len_ref, gi_ref, whh_ref, dw_ref, db_ref, o_ref,
                         h_ref, acc_ref, *, t_block, hidden):
    """One (batch-block, time-block) grid cell of the GRU recurrence.

    Batch sits on lanes (last axis = TB).

    len_ref : (1, TB)   int32  per-column sequence lengths
    gi_ref  : (T, 3H, TB) bf16 precomputed input gates W_ih @ x_t, rows [r|z|n]
    whh_ref : (3H, H)   bf16   recurrent weights (PyTorch weight_hh_l0 layout)
    dw_ref  : (E, H)    f32    dense head weight
    db_ref  : (E, 1)    f32    dense head bias (column)
    o_ref   : (E, TB)   f32    output block, written once at the last time block
    h_ref   : (H, TB)   f32    persistent hidden-state scratch
    acc_ref : (H, TB)   f32    persistent h_{len-1} gather scratch
    """
    H = hidden
    ti = pl.program_id(1)

    @pl.when(ti == 0)
    def _():
        h_ref[...] = jnp.zeros_like(h_ref)
        acc_ref[...] = jnp.zeros_like(acc_ref)

    last_t = len_ref[...] - 1       # (1, TB) int32; -1 never matches (len == 0)
    t0 = ti * t_block

    def step(i, carry):
        h_prev, o_acc = carry
        g = gi_ref[i].astype(jnp.float32)                       # (3H, TB) f32
        # Single fused gate matmul; W_hh is read from VMEM inside the loop so
        # it is not pinned in vregs across the unrolled body.
        gh = jnp.dot(whh_ref[...], h_prev.astype(jnp.bfloat16),
                     preferred_element_type=jnp.float32)        # (3H, TB) f32
        r = jax.nn.sigmoid(g[0:H] + gh[0:H])
        z = jax.nn.sigmoid(g[H:2 * H] + gh[H:2 * H])
        n = jnp.tanh(g[2 * H:3 * H] + r * gh[2 * H:3 * H])
        h_new = (1.0 - z) * n + z * h_prev
        o_acc = jnp.where(last_t == (t0 + i), h_new, o_acc)
        return h_new, o_acc

    h_fin, o_fin = lax.fori_loop(0, t_block, step,
                                 (h_ref[...], acc_ref[...]), unroll=True)
    h_ref[...] = h_fin
    acc_ref[...] = o_fin

    # Fused dense head + bias: applied exactly once per batch block.
    @pl.when(ti == pl.num_programs(1) - 1)
    def _():
        o_ref[...] = jnp.dot(dw_ref[...], o_fin,
                             preferred_element_type=jnp.float32) + db_ref[...]


def gru_last_dense_pallas(lengths, gi, whh, dense_w, dense_b, *,
                          hidden, t_block, tb):
    """lengths (1,Bp) i32, gi (Sp,3H,Bp) bf16, whh (3H,H) bf16,
    dense_w (E,H) f32, dense_b (E,1) f32  ->  (E, Bp) f32."""
    s_pad, three_h, b_pad = gi.shape
    e_dim = dense_w.shape[0]

    kernel = functools.partial(gru_recurrent_kernel,
                               t_block=t_block, hidden=hidden)

    # Explicit VMEM budget with headroom (v7x has only 64 MiB physical).
    gi_block = t_block * three_h * tb * 2                    # bf16, per buffer
    need = (2 * gi_block                                     # gi double-buffer
            + 2 * three_h * hidden * 2                       # W_hh
            + 2 * e_dim * hidden * 4 + 2 * e_dim * 4         # dense w / b
            + 2 * e_dim * tb * 4                             # output block
            + 2 * hidden * tb * 4                            # h + gather scratch
            + 2 * tb * 4)                                    # lengths
    vmem_limit = int(min(64 * 2**20, max(32 * 2**20, 2 * need)))

    return pl.pallas_call(
        kernel,
        out_shape=jax.ShapeDtypeStruct((e_dim, b_pad), jnp.float32),
        grid_spec=pltpu.PrefetchScalarGridSpec(
            num_scalar_prefetch=0,
            grid=(b_pad // tb, s_pad // t_block),
            in_specs=[
                pl.BlockSpec((1, tb), lambda bi, ti: (0, bi)),            # lens
                pl.BlockSpec((t_block, three_h, tb),
                             lambda bi, ti: (ti, 0, bi)),                 # gi
                pl.BlockSpec((three_h, hidden), lambda bi, ti: (0, 0)),   # W_hh
                pl.BlockSpec((e_dim, hidden), lambda bi, ti: (0, 0)),     # dense W
                pl.BlockSpec((e_dim, 1), lambda bi, ti: (0, 0)),          # dense b
            ],
            out_specs=pl.BlockSpec((e_dim, tb), lambda bi, ti: (0, bi)),
            scratch_shapes=[pltpu.VMEM((hidden, tb), jnp.float32),        # h
                            pltpu.VMEM((hidden, tb), jnp.float32)],       # h@len-1
        ),
        compiler_params=pltpu.CompilerParams(
            dimension_semantics=("parallel", "arbitrary"),
            vmem_limit_bytes=vmem_limit,
        ),
    )(lengths, gi, whh, dense_w, dense_b)


def user_encoder_forward(log_vec, log_mask, params):
    """log_vec: (B, S, E) float32, log_mask: (B, S) -> (B, E) float32."""
    B, S, E = log_vec.shape
    H = params["weight_hh"].shape[1]

    # TODO(synk): emb_dropout(p=0.2) is identity in eval mode; training-mode
    # dropout would need pltpu.prng_* masking fused into the input projection.

    TB = 128                       # batch block -> lane axis (128 lanes dense)
    T_BLOCK = min(32, S)           # time steps per grid cell (unrolled)
    B_pad = _round_up(B, TB)
    S_pad = _round_up(S, T_BLOCK)

    # Hoisted input projection: one bf16 MXU matmul with f32 accumulation,
    # emitted directly in the lane-dense time-major layout (S, 3H, B) and
    # streamed to the kernel in bf16 (halves the dominant HBM/DMA traffic).
    gi = jnp.einsum(
        "bse,ge->sgb",
        log_vec.astype(jnp.bfloat16),
        params["weight_ih"].astype(jnp.bfloat16),
        preferred_element_type=jnp.float32,
    ).astype(jnp.bfloat16)                                     # (S, 3H, B)
    gi = jnp.pad(gi, ((0, S_pad - S), (0, 0), (0, B_pad - B)))

    lengths = jnp.sum(log_mask, axis=-1).astype(jnp.int32)     # (B,)
    # NOTE: rows with length 0 give last_t = -1 (never matched) -> dense bias;
    # PyTorch's gather with index -1 would be out of range for such rows.
    lengths = jnp.pad(lengths, (0, B_pad - B)).reshape(1, B_pad)

    whh = params["weight_hh"].astype(jnp.bfloat16)             # (3H, H)
    dense_w = params["dense_w"]                                # (E, H) f32
    dense_b = params["dense_b"].reshape(E, 1)                  # (E, 1) f32

    out = gru_last_dense_pallas(lengths, gi, whh, dense_w, dense_b,
                                hidden=H, t_block=T_BLOCK, tb=TB)   # (E, B_pad)
    return out[:, :B].T                                        # (B, E)


def user_encoder_reference(log_vec, log_mask, params):
    """Pure-JAX reference using the same bf16 projection / recurrent-dot casts
    as the kernel, so the comparison isolates the Pallas recurrence, the
    last-step gather and the fused dense head."""
    B, S, E = log_vec.shape
    H = params["weight_hh"].shape[1]
    gi = jnp.einsum("bse,ge->sgb", log_vec.astype(jnp.bfloat16),
                    params["weight_ih"].astype(jnp.bfloat16),
                    preferred_element_type=jnp.float32).astype(jnp.bfloat16)
    whh = params["weight_hh"].astype(jnp.bfloat16)

    def step(h, g):                                            # h (H,B), g (3H,B)
        g = g.astype(jnp.float32)
        gh = jnp.dot(whh, h.astype(jnp.bfloat16),
                     preferred_element_type=jnp.float32)
        r = jax.nn.sigmoid(g[0:H] + gh[0:H])
        z = jax.nn.sigmoid(g[H:2 * H] + gh[H:2 * H])
        n = jnp.tanh(g[2 * H:3 * H] + r * gh[2 * H:3 * H])
        h_new = (1.0 - z) * n + z * h
        return h_new, h_new

    h0 = jnp.zeros((H, B), jnp.float32)
    _, hs = lax.scan(step, h0, gi)                             # (S, H, B)
    lengths = jnp.sum(log_mask, axis=-1).astype(jnp.int32)     # (B,)
    h_last = hs[lengths - 1, :, jnp.arange(B)]                 # (B, H)
    return h_last @ params["dense_w"].T + params["dense_b"]


def init_params(key, emb_size):
    """Deterministic parameter init matching the module's shapes."""
    hidden = emb_size // 4
    k1, k2, k3, k4 = jax.random.split(key, 4)

    def xavier_uniform(k, shape):
        fan_out, fan_in = shape
        limit = (6.0 / (fan_in + fan_out)) ** 0.5
        return jax.random.uniform(k, shape, jnp.float32, -limit, limit)

    # nn.GRU(bias=False): weight_ih_l0 (3H, E), weight_hh_l0 (3H, H), order [r,z,n]
    weight_ih = xavier_uniform(k1, (3 * hidden, emb_size))
    weight_hh = xavier_uniform(k2, (3 * hidden, hidden))
    # nn.Linear(H, E): weight (E, H), bias (E,)
    bound = 1.0 / (hidden ** 0.5)
    dense_w = jax.random.uniform(k3, (emb_size, hidden), jnp.float32, -bound, bound)
    dense_b = jax.random.uniform(k4, (emb_size,), jnp.float32, -bound, bound)
    return {
        "weight_ih": weight_ih,
        "weight_hh": weight_hh,
        "dense_w": dense_w,
        "dense_b": dense_b,
    }


if __name__ == "__main__":
    # Small shapes: batch=2, seq=8, word_embedding_dim=32 -> hidden=8
    B, S, E = 2, 8, 32

    key = jax.random.PRNGKey(0)
    k_params, k_vec = jax.random.split(key)

    params = init_params(k_params, E)
    log_vec = jax.random.normal(k_vec, (B, S, E), jnp.float32)

    # Valid-prefix mask with per-example lengths [5, 8]
    seq_lens = jnp.array([5, 8], dtype=jnp.int32)
    log_mask = (jnp.arange(S)[None, :] < seq_lens[:, None]).astype(jnp.float32)

    out = jax.jit(user_encoder_forward)(log_vec, log_mask, params)
    jax.block_until_ready(out)
    assert out.shape == (B, E), out.shape

    ref = user_encoder_reference(log_vec, log_mask, params)
    max_err = float(jnp.max(jnp.abs(out - ref)))
    assert jnp.allclose(out, ref, rtol=1e-3, atol=1e-3), max_err

    print("KERNEL_OK")
</pallas_src>

<mosaic_0001>
module attributes {stable_mosaic.version = 11 : i64} {
  func.func @gru_recurrent_kernel(%arg0: i32, %arg1: i32, %arg2: memref<1x128xi32, #tpu.memory_space<vmem>>, %arg3: memref<8x24x128xbf16, #tpu.memory_space<vmem>>, %arg4: memref<24x8xbf16, #tpu.memory_space<vmem>>, %arg5: memref<32x8xf32, #tpu.memory_space<vmem>>, %arg6: memref<32x1xf32, #tpu.memory_space<vmem>>, %arg7: memref<32x128xf32, #tpu.memory_space<vmem>>, %arg8: memref<8x128xf32, #tpu.memory_space<vmem>>, %arg9: memref<8x128xf32, #tpu.memory_space<vmem>>) attributes {dimension_semantics = [#tpu.dimension_semantics<parallel>, #tpu.dimension_semantics<arbitrary>], iteration_bounds = array<i64: 1, 1>, scalar_prefetch = 0 : i64, scratch_operands = 2 : i64, tpu.core_type = #tpu.core_type<tc>, window_params = [{transform_indices = @transform_0, window_bounds = array<i64: 1, 128>}, {transform_indices = @transform_1, window_bounds = array<i64: 8, 24, 128>}, {pipeline_mode = #tpu.pipeline_mode<synchronous>, transform_indices = @transform_2, window_bounds = array<i64: 24, 8>}, {pipeline_mode = #tpu.pipeline_mode<synchronous>, transform_indices = @transform_3, window_bounds = array<i64: 32, 8>}, {pipeline_mode = #tpu.pipeline_mode<synchronous>, transform_indices = @transform_4, window_bounds = array<i64: 32, 1>}, {transform_indices = @transform_5, window_bounds = array<i64: 32, 128>}]} {
    %c0_i32 = arith.constant 0 : i32
    %0 = arith.cmpi eq, %arg1, %c0_i32 : i32
    %1 = arith.extui %0 : i1 to i32
    %c0_i32_0 = arith.constant 0 : i32
    %2 = arith.cmpi ne, %1, %c0_i32_0 : i32
    scf.if %2 {
      %cst_78 = arith.constant 0.000000e+00 : f32
      %326 = vector.broadcast %cst_78 : f32 to vector<8x128xf32>
      %c0_79 = arith.constant 0 : index
      %c0_80 = arith.constant 0 : index
      %327 = vector.load %arg8[%c0_79, %c0_80] : memref<8x128xf32, #tpu.memory_space<vmem>>, vector<8x128xf32>
      tpu.vector_store %arg8[%c0_79, %c0_80], %326 {strides = array<i32>} : memref<8x128xf32, #tpu.memory_space<vmem>>, vector<8x128xf32>,
      %cst_81 = arith.constant 0.000000e+00 : f32
      %328 = vector.broadcast %cst_81 : f32 to vector<8x128xf32>
      %c0_82 = arith.constant 0 : index
      %c0_83 = arith.constant 0 : index
      %329 = vector.load %arg9[%c0_82, %c0_83] : memref<8x128xf32, #tpu.memory_space<vmem>>, vector<8x128xf32>
      tpu.vector_store %arg9[%c0_82, %c0_83], %328 {strides = array<i32>} : memref<8x128xf32, #tpu.memory_space<vmem>>, vector<8x128xf32>,
    } else {
    }
    %c0 = arith.constant 0 : index
    %c0_1 = arith.constant 0 : index
    %3 = vector.load %arg2[%c0, %c0_1] : memref<1x128xi32, #tpu.memory_space<vmem>>, vector<1x128xi32>
    %c1_i32 = arith.constant 1 : i32
    %4 = vector.broadcast %c1_i32 : i32 to vector<1x128xi32>
    %5 = arith.subi %3, %4 : vector<1x128xi32>
    %c8_i32 = arith.constant 8 : i32
    %6 = arith.muli %arg1, %c8_i32 : i32
    %c0_2 = arith.constant 0 : index
    %c0_3 = arith.constant 0 : index
    %7 = vector.load %arg8[%c0_2, %c0_3] : memref<8x128xf32, #tpu.memory_space<vmem>>, vector<8x128xf32>
    %c0_4 = arith.constant 0 : index
    %c0_5 = arith.constant 0 : index
    %8 = vector.load %arg9[%c0_4, %c0_5] : memref<8x128xf32, #tpu.memory_space<vmem>>, vector<8x128xf32>
    %c0_i32_6 = arith.constant 0 : i32
    %9 = arith.index_cast %c0_i32_6 : i32 to index
    %c0_7 = arith.constant 0 : index
    %c0_8 = arith.constant 0 : index
    %10 = vector.load %arg3[%9, %c0_7, %c0_8] : memref<8x24x128xbf16, #tpu.memory_space<vmem>>, vector<1x24x128xbf16>
    %11 = vector.shape_cast %10 : vector<1x24x128xbf16> to vector<24x128xbf16>
    %12 = arith.extf %11 : vector<24x128xbf16> to vector<24x128xf32>
    %c0_9 = arith.constant 0 : index
    %c0_10 = arith.constant 0 : index
    %13 = vector.load %arg4[%c0_9, %c0_10] : memref<24x8xbf16, #tpu.memory_space<vmem>>, vector<24x8xbf16>
    %14 = arith.truncf %7 : vector<8x128xf32> to vector<8x128xbf16>
    %cst = arith.constant dense<0.000000e+00> : vector<24x128xf32>
    %15 = tpu.matmul %13, %14, %cst {dimension_numbers = #tpu.dot_dimension_numbers<[1], [0], [0], [1], [0, 0, 1, 1], [], []>} : vector<24x8xbf16>, vector<8x128xbf16>, vector<24x128xf32> -> vector<24x128xf32>
    %16 = vector.extract_strided_slice %12 {offsets = [0, 0], sizes = [8, 128], strides = [1, 1]} : vector<24x128xf32> to vector<8x128xf32>
    %17 = vector.extract_strided_slice %15 {offsets = [0, 0], sizes = [8, 128], strides = [1, 1]} : vector<24x128xf32> to vector<8x128xf32>
    %18 = arith.addf %16, %17 : vector<8x128xf32>
    %19 = arith.negf %18 : vector<8x128xf32>
    %20 = math.exp %19 : vector<8x128xf32>
    %cst_11 = arith.constant 1.000000e+00 : f32
    %21 = vector.broadcast %cst_11 : f32 to vector<8x128xf32>
    %22 = arith.addf %21, %20 : vector<8x128xf32>
    %23 = arith.divf %21, %22 : vector<8x128xf32>
    %24 = vector.extract_strided_slice %12 {offsets = [8, 0], sizes = [8, 128], strides = [1, 1]} : vector<24x128xf32> to vector<8x128xf32>
    %25 = vector.extract_strided_slice %15 {offsets = [8, 0], sizes = [8, 128], strides = [1, 1]} : vector<24x128xf32> to vector<8x128xf32>
    %26 = arith.addf %24, %25 : vector<8x128xf32>
    %27 = arith.negf %26 : vector<8x128xf32>
    %28 = math.exp %27 : vector<8x128xf32>
    %cst_12 = arith.constant 1.000000e+00 : f32
    %29 = vector.broadcast %cst_12 : f32 to vector<8x128xf32>
    %30 = arith.addf %29, %28 : vector<8x128xf32>
    %31 = arith.divf %29, %30 : vector<8x128xf32>
    %32 = vector.extract_strided_slice %12 {offsets = [16, 0], sizes = [8, 128], strides = [1, 1]} : vector<24x128xf32> to vector<8x128xf32>
    %33 = vector.extract_strided_slice %15 {offsets = [16, 0], sizes = [8, 128], strides = [1, 1]} : vector<24x128xf32> to vector<8x128xf32>
    %34 = arith.mulf %23, %33 : vector<8x128xf32>
    %35 = arith.addf %32, %34 : vector<8x128xf32>
    %36 = math.tanh %35 : vector<8x128xf32>
    %cst_13 = arith.constant 1.000000e+00 : f32
    %37 = vector.broadcast %cst_13 : f32 to vector<8x128xf32>
    %38 = arith.subf %37, %31 : vector<8x128xf32>
    %39 = arith.mulf %38, %36 : vector<8x128xf32>
    %40 = arith.mulf %31, %7 : vector<8x128xf32>
    %41 = arith.addf %39, %40 : vector<8x128xf32>
    %42 = arith.addi %6, %c0_i32_6 : i32
    %43 = vector.broadcast %42 : i32 to vector<1x128xi32>
    %44 = arith.cmpi eq, %5, %43 : vector<1x128xi32>
    %45 = vector.shape_cast %44 : vector<1x128xi1> to vector<1x128xi1>
    %46 = vector.broadcast %45 : vector<1x128xi1> to vector<8x128xi1>
    %47 = arith.select %46, %41, %8 : vector<8x128xi1>, vector<8x128xf32>
    %c1_i32_14 = arith.constant 1 : i32
    %48 = arith.index_cast %c1_i32_14 : i32 to index
    %c0_15 = arith.constant 0 : index
    %c0_16 = arith.constant 0 : index
    %49 = vector.load %arg3[%48, %c0_15, %c0_16] : memref<8x24x128xbf16, #tpu.memory_space<vmem>>, vector<1x24x128xbf16>
    %50 = vector.shape_cast %49 : vector<1x24x128xbf16> to vector<24x128xbf16>
    %51 = arith.extf %50 : vector<24x128xbf16> to vector<24x128xf32>
    %c0_17 = arith.constant 0 : index
    %c0_18 = arith.constant 0 : index
    %52 = vector.load %arg4[%c0_17, %c0_18] : memref<24x8xbf16, #tpu.memory_space<vmem>>, vector<24x8xbf16>
    %53 = arith.truncf %41 : vector<8x128xf32> to vector<8x128xbf16>
    %cst_19 = arith.constant dense<0.000000e+00> : vector<24x128xf32>
    %54 = tpu.matmul %52, %53, %cst_19 {dimension_numbers = #tpu.dot_dimension_numbers<[1], [0], [0], [1], [0, 0, 1, 1], [], []>} : vector<24x8xbf16>, vector<8x128xbf16>, vector<24x128xf32> -> vector<24x128xf32>
    %55 = vector.extract_strided_slice %51 {offsets = [0, 0], sizes = [8, 128], strides = [1, 1]} : vector<24x128xf32> to vector<8x128xf32>
    %56 = vector.extract_strided_slice %54 {offsets = [0, 0], sizes = [8, 128], strides = [1, 1]} : vector<24x128xf32> to vector<8x128xf32>
    %57 = arith.addf %55, %56 : vector<8x128xf32>
    %58 = arith.negf %57 : vector<8x128xf32>
    %59 = math.exp %58 : vector<8x128xf32>
    %cst_20 = arith.constant 1.000000e+00 : f32
    %60 = vector.broadcast %cst_20 : f32 to vector<8x128xf32>
    %61 = arith.addf %60, %59 : vector<8x128xf32>
    %62 = arith.divf %60, %61 : vector<8x128xf32>
    %63 = vector.extract_strided_slice %51 {offsets = [8, 0], sizes = [8, 128], strides = [1, 1]} : vector<24x128xf32> to vector<8x128xf32>
    %64 = vector.extract_strided_slice %54 {offsets = [8, 0], sizes = [8, 128], strides = [1, 1]} : vector<24x128xf32> to vector<8x128xf32>
    %65 = arith.addf %63, %64 : vector<8x128xf32>
    %66 = arith.negf %65 : vector<8x128xf32>
    %67 = math.exp %66 : vector<8x128xf32>
    %cst_21 = arith.constant 1.000000e+00 : f32
    %68 = vector.broadcast %cst_21 : f32 to vector<8x128xf32>
    %69 = arith.addf %68, %67 : vector<8x128xf32>
    %70 = arith.divf %68, %69 : vector<8x128xf32>
    %71 = vector.extract_strided_slice %51 {offsets = [16, 0], sizes = [8, 128], strides = [1, 1]} : vector<24x128xf32> to vector<8x128xf32>
    %72 = vector.extract_strided_slice %54 {offsets = [16, 0], sizes = [8, 128], strides = [1, 1]} : vector<24x128xf32> to vector<8x128xf32>
    %73 = arith.mulf %62, %72 : vector<8x128xf32>
    %74 = arith.addf %71, %73 : vector<8x128xf32>
    %75 = math.tanh %74 : vector<8x128xf32>
    %cst_22 = arith.constant 1.000000e+00 : f32
    %76 = vector.broadcast %cst_22 : f32 to vector<8x128xf32>
    %77 = arith.subf %76, %70 : vector<8x128xf32>
    %78 = arith.mulf %77, %75 : vector<8x128xf32>
    %79 = arith.mulf %70, %41 : vector<8x128xf32>
    %80 = arith.addf %78, %79 : vector<8x128xf32>
    %81 = arith.addi %6, %c1_i32_14 : i32
    %82 = vector.broadcast %81 : i32 to vector<1x128xi32>
    %83 = arith.cmpi eq, %5, %82 : vector<1x128xi32>
    %84 = vector.shape_cast %83 : vector<1x128xi1> to vector<1x128xi1>
    %85 = vector.broadcast %84 : vector<1x128xi1> to vector<8x128xi1>
    %86 = arith.select %85, %80, %47 : vector<8x128xi1>, vector<8x128xf32>
    %c2_i32 = arith.constant 2 : i32
    %87 = arith.index_cast %c2_i32 : i32 to index
    %c0_23 = arith.constant 0 : index
    %c0_24 = arith.constant 0 : index
    %88 = vector.load %arg3[%87, %c0_23, %c0_24] : memref<8x24x128xbf16, #tpu.memory_space<vmem>>, vector<1x24x128xbf16>
    %89 = vector.shape_cast %88 : vector<1x24x128xbf16> to vector<24x128xbf16>
    %90 = arith.extf %89 : vector<24x128xbf16> to vector<24x128xf32>
    %c0_25 = arith.constant 0 : index
    %c0_26 = arith.constant 0 : index
    %91 = vector.load %arg4[%c0_25, %c0_26] : memref<24x8xbf16, #tpu.memory_space<vmem>>, vector<24x8xbf16>
    %92 = arith.truncf %80 : vector<8x128xf32> to vector<8x128xbf16>
    %cst_27 = arith.constant dense<0.000000e+00> : vector<24x128xf32>
    %93 = tpu.matmul %91, %92, %cst_27 {dimension_numbers = #tpu.dot_dimension_numbers<[1], [0], [0], [1], [0, 0, 1, 1], [], []>} : vector<24x8xbf16>, vector<8x128xbf16>, vector<24x128xf32> -> vector<24x128xf32>
    %94 = vector.extract_strided_slice %90 {offsets = [0, 0], sizes = [8, 128], strides = [1, 1]} : vector<24x128xf32> to vector<8x128xf32>
    %95 = vector.extract_strided_slice %93 {offsets = [0, 0], sizes = [8, 128], strides = [1, 1]} : vector<24x128xf32> to vector<8x128xf32>
    %96 = arith.addf %94, %95 : vector<8x128xf32>
    %97 = arith.negf %96 : vector<8x128xf32>
    %98 = math.exp %97 : vector<8x128xf32>
    %cst_28 = arith.constant 1.000000e+00 : f32
    %99 = vector.broadcast %cst_28 : f32 to vector<8x128xf32>
    %100 = arith.addf %99, %98 : vector<8x128xf32>
    %101 = arith.divf %99, %100 : vector<8x128xf32>
    %102 = vector.extract_strided_slice %90 {offsets = [8, 0], sizes = [8, 128], strides = [1, 1]} : vector<24x128xf32> to vector<8x128xf32>
    %103 = vector.extract_strided_slice %93 {offsets = [8, 0], sizes = [8, 128], strides = [1, 1]} : vector<24x128xf32> to vector<8x128xf32>
    %104 = arith.addf %102, %103 : vector<8x128xf32>
    %105 = arith.negf %104 : vector<8x128xf32>
    %106 = math.exp %105 : vector<8x128xf32>
    %cst_29 = arith.constant 1.000000e+00 : f32
    %107 = vector.broadcast %cst_29 : f32 to vector<8x128xf32>
    %108 = arith.addf %107, %106 : vector<8x128xf32>
    %109 = arith.divf %107, %108 : vector<8x128xf32>
    %110 = vector.extract_strided_slice %90 {offsets = [16, 0], sizes = [8, 128], strides = [1, 1]} : vector<24x128xf32> to vector<8x128xf32>
    %111 = vector.extract_strided_slice %93 {offsets = [16, 0], sizes = [8, 128], strides = [1, 1]} : vector<24x128xf32> to vector<8x128xf32>
    %112 = arith.mulf %101, %111 : vector<8x128xf32>
    %113 = arith.addf %110, %112 : vector<8x128xf32>
    %114 = math.tanh %113 : vector<8x128xf32>
    %cst_30 = arith.constant 1.000000e+00 : f32
    %115 = vector.broadcast %cst_30 : f32 to vector<8x128xf32>
    %116 = arith.subf %115, %109 : vector<8x128xf32>
    %117 = arith.mulf %116, %114 : vector<8x128xf32>
    %118 = arith.mulf %109, %80 : vector<8x128xf32>
    %119 = arith.addf %117, %118 : vector<8x128xf32>
    %120 = arith.addi %6, %c2_i32 : i32
    %121 = vector.broadcast %120 : i32 to vector<1x128xi32>
    %122 = arith.cmpi eq, %5, %121 : vector<1x128xi32>
    %123 = vector.shape_cast %122 : vector<1x128xi1> to vector<1x128xi1>
    %124 = vector.broadcast %123 : vector<1x128xi1> to vector<8x128xi1>
    %125 = arith.select %124, %119, %86 : vector<8x128xi1>, vector<8x128xf32>
    %c3_i32 = arith.constant 3 : i32
    %126 = arith.index_cast %c3_i32 : i32 to index
    %c0_31 = arith.constant 0 : index
    %c0_32 = arith.constant 0 : index
    %127 = vector.load %arg3[%126, %c0_31, %c0_32] : memref<8x24x128xbf16, #tpu.memory_space<vmem>>, vector<1x24x128xbf16>
    %128 = vector.shape_cast %127 : vector<1x24x128xbf16> to vector<24x128xbf16>
    %129 = arith.extf %128 : vector<24x128xbf16> to vector<24x128xf32>
    %c0_33 = arith.constant 0 : index
    %c0_34 = arith.constant 0 : index
    %130 = vector.load %arg4[%c0_33, %c0_34] : memref<24x8xbf16, #tpu.memory_space<vmem>>, vector<24x8xbf16>
    %131 = arith.truncf %119 : vector<8x128xf32> to vector<8x128xbf16>
    %cst_35 = arith.constant dense<0.000000e+00> : vector<24x128xf32>
    %132 = tpu.matmul %130, %131, %cst_35 {dimension_numbers = #tpu.dot_dimension_numbers<[1], [0], [0], [1], [0, 0, 1, 1], [], []>} : vector<24x8xbf16>, vector<8x128xbf16>, vector<24x128xf32> -> vector<24x128xf32>
    %133 = vector.extract_strided_slice %129 {offsets = [0, 0], sizes = [8, 128], strides = [1, 1]} : vector<24x128xf32> to vector<8x128xf32>
    %134 = vector.extract_strided_slice %132 {offsets = [0, 0], sizes = [8, 128], strides = [1, 1]} : vector<24x128xf32> to vector<8x128xf32>
    %135 = arith.addf %133, %134 : vector<8x128xf32>
    %136 = arith.negf %135 : vector<8x128xf32>
    %137 = math.exp %136 : vector<8x128xf32>
    %cst_36 = arith.constant 1.000000e+00 : f32
    %138 = vector.broadcast %cst_36 : f32 to vector<8x128xf32>
    %139 = arith.addf %138, %137 : vector<8x128xf32>
    %140 = arith.divf %138, %139 : vector<8x128xf32>
    %141 = vector.extract_strided_slice %129 {offsets = [8, 0], sizes = [8, 128], strides = [1, 1]} : vector<24x128xf32> to vector<8x128xf32>
    %142 = vector.extract_strided_slice %132 {offsets = [8, 0], sizes = [8, 128], strides = [1, 1]} : vector<24x128xf32> to vector<8x128xf32>
    %143 = arith.addf %141, %142 : vector<8x128xf32>
    %144 = arith.negf %143 : vector<8x128xf32>
    %145 = math.exp %144 : vector<8x128xf32>
    %cst_37 = arith.constant 1.000000e+00 : f32
    %146 = vector.broadcast %cst_37 : f32 to vector<8x128xf32>
    %147 = arith.addf %146, %145 : vector<8x128xf32>
    %148 = arith.divf %146, %147 : vector<8x128xf32>
    %149 = vector.extract_strided_slice %129 {offsets = [16, 0], sizes = [8, 128], strides = [1, 1]} : vector<24x128xf32> to vector<8x128xf32>
    %150 = vector.extract_strided_slice %132 {offsets = [16, 0], sizes = [8, 128], strides = [1, 1]} : vector<24x128xf32> to vector<8x128xf32>
    %151 = arith.mulf %140, %150 : vector<8x128xf32>
    %152 = arith.addf %149, %151 : vector<8x128xf32>
    %153 = math.tanh %152 : vector<8x128xf32>
    %cst_38 = arith.constant 1.000000e+00 : f32
    %154 = vector.broadcast %cst_38 : f32 to vector<8x128xf32>
    %155 = arith.subf %154, %148 : vector<8x128xf32>
    %156 = arith.mulf %155, %153 : vector<8x128xf32>
    %157 = arith.mulf %148, %119 : vector<8x128xf32>
    %158 = arith.addf %156, %157 : vector<8x128xf32>
    %159 = arith.addi %6, %c3_i32 : i32
    %160 = vector.broadcast %159 : i32 to vector<1x128xi32>
    %161 = arith.cmpi eq, %5, %160 : vector<1x128xi32>
    %162 = vector.shape_cast %161 : vector<1x128xi1> to vector<1x128xi1>
    %163 = vector.broadcast %162 : vector<1x128xi1> to vector<8x128xi1>
    %164 = arith.select %163, %158, %125 : vector<8x128xi1>, vector<8x128xf32>
    %c4_i32 = arith.constant 4 : i32
    %165 = arith.index_cast %c4_i32 : i32 to index
    %c0_39 = arith.constant 0 : index
    %c0_40 = arith.constant 0 : index
    %166 = vector.load %arg3[%165, %c0_39, %c0_40] : memref<8x24x128xbf16, #tpu.memory_space<vmem>>, vector<1x24x128xbf16>
    %167 = vector.shape_cast %166 : vector<1x24x128xbf16> to vector<24x128xbf16>
    %168 = arith.extf %167 : vector<24x128xbf16> to vector<24x128xf32>
    %c0_41 = arith.constant 0 : index
    %c0_42 = arith.constant 0 : index
    %169 = vector.load %arg4[%c0_41, %c0_42] : memref<24x8xbf16, #tpu.memory_space<vmem>>, vector<24x8xbf16>
    %170 = arith.truncf %158 : vector<8x128xf32> to vector<8x128xbf16>
    %cst_43 = arith.constant dense<0.000000e+00> : vector<24x128xf32>
    %171 = tpu.matmul %169, %170, %cst_43 {dimension_numbers = #tpu.dot_dimension_numbers<[1], [0], [0], [1], [0, 0, 1, 1], [], []>} : vector<24x8xbf16>, vector<8x128xbf16>, vector<24x128xf32> -> vector<24x128xf32>
    %172 = vector.extract_strided_slice %168 {offsets = [0, 0], sizes = [8, 128], strides = [1, 1]} : vector<24x128xf32> to vector<8x128xf32>
    %173 = vector.extract_strided_slice %171 {offsets = [0, 0], sizes = [8, 128], strides = [1, 1]} : vector<24x128xf32> to vector<8x128xf32>
    %174 = arith.addf %172, %173 : vector<8x128xf32>
    %175 = arith.negf %174 : vector<8x128xf32>
    %176 = math.exp %175 : vector<8x128xf32>
    %cst_44 = arith.constant 1.000000e+00 : f32
    %177 = vector.broadcast %cst_44 : f32 to vector<8x128xf32>
    %178 = arith.addf %177, %176 : vector<8x128xf32>
    %179 = arith.divf %177, %178 : vector<8x128xf32>
    %180 = vector.extract_strided_slice %168 {offsets = [8, 0], sizes = [8, 128], strides = [1, 1]} : vector<24x128xf32> to vector<8x128xf32>
    %181 = vector.extract_strided_slice %171 {offsets = [8, 0], sizes = [8, 128], strides = [1, 1]} : vector<24x128xf32> to vector<8x128xf32>
    %182 = arith.addf %180, %181 : vector<8x128xf32>
    %183 = arith.negf %182 : vector<8x128xf32>
    %184 = math.exp %183 : vector<8x128xf32>
    %cst_45 = arith.constant 1.000000e+00 : f32
    %185 = vector.broadcast %cst_45 : f32 to vector<8x128xf32>
    %186 = arith.addf %185, %184 : vector<8x128xf32>
    %187 = arith.divf %185, %186 : vector<8x128xf32>
    %188 = vector.extract_strided_slice %168 {offsets = [16, 0], sizes = [8, 128], strides = [1, 1]} : vector<24x128xf32> to vector<8x128xf32>
    %189 = vector.extract_strided_slice %171 {offsets = [16, 0], sizes = [8, 128], strides = [1, 1]} : vector<24x128xf32> to vector<8x128xf32>
    %190 = arith.mulf %179, %189 : vector<8x128xf32>
    %191 = arith.addf %188, %190 : vector<8x128xf32>
    %192 = math.tanh %191 : vector<8x128xf32>
    %cst_46 = arith.constant 1.000000e+00 : f32
    %193 = vector.broadcast %cst_46 : f32 to vector<8x128xf32>
    %194 = arith.subf %193, %187 : vector<8x128xf32>
    %195 = arith.mulf %194, %192 : vector<8x128xf32>
    %196 = arith.mulf %187, %158 : vector<8x128xf32>
    %197 = arith.addf %195, %196 : vector<8x128xf32>
    %198 = arith.addi %6, %c4_i32 : i32
    %199 = vector.broadcast %198 : i32 to vector<1x128xi32>
    %200 = arith.cmpi eq, %5, %199 : vector<1x128xi32>
    %201 = vector.shape_cast %200 : vector<1x128xi1> to vector<1x128xi1>
    %202 = vector.broadcast %201 : vector<1x128xi1> to vector<8x128xi1>
    %203 = arith.select %202, %197, %164 : vector<8x128xi1>, vector<8x128xf32>
    %c5_i32 = arith.constant 5 : i32
    %204 = arith.index_cast %c5_i32 : i32 to index
    %c0_47 = arith.constant 0 : index
    %c0_48 = arith.constant 0 : index
    %205 = vector.load %arg3[%204, %c0_47, %c0_48] : memref<8x24x128xbf16, #tpu.memory_space<vmem>>, vector<1x24x128xbf16>
    %206 = vector.shape_cast %205 : vector<1x24x128xbf16> to vector<24x128xbf16>
    %207 = arith.extf %206 : vector<24x128xbf16> to vector<24x128xf32>
    %c0_49 = arith.constant 0 : index
    %c0_50 = arith.constant 0 : index
    %208 = vector.load %arg4[%c0_49, %c0_50] : memref<24x8xbf16, #tpu.memory_space<vmem>>, vector<24x8xbf16>
    %209 = arith.truncf %197 : vector<8x128xf32> to vector<8x128xbf16>
    %cst_51 = arith.constant dense<0.000000e+00> : vector<24x128xf32>
    %210 = tpu.matmul %208, %209, %cst_51 {dimension_numbers = #tpu.dot_dimension_numbers<[1], [0], [0], [1], [0, 0, 1, 1], [], []>} : vector<24x8xbf16>, vector<8x128xbf16>, vector<24x128xf32> -> vector<24x128xf32>
    %211 = vector.extract_strided_slice %207 {offsets = [0, 0], sizes = [8, 128], strides = [1, 1]} : vector<24x128xf32> to vector<8x128xf32>
    %212 = vector.extract_strided_slice %210 {offsets = [0, 0], sizes = [8, 128], strides = [1, 1]} : vector<24x128xf32> to vector<8x128xf32>
    %213 = arith.addf %211, %212 : vector<8x128xf32>
    %214 = arith.negf %213 : vector<8x128xf32>
    %215 = math.exp %214 : vector<8x128xf32>
    %cst_52 = arith.constant 1.000000e+00 : f32
    %216 = vector.broadcast %cst_52 : f32 to vector<8x128xf32>
    %217 = arith.addf %216, %215 : vector<8x128xf32>
    %218 = arith.divf %216, %217 : vector<8x128xf32>
    %219 = vector.extract_strided_slice %207 {offsets = [8, 0], sizes = [8, 128], strides = [1, 1]} : vector<24x128xf32> to vector<8x128xf32>
    %220 = vector.extract_strided_slice %210 {offsets = [8, 0], sizes = [8, 128], strides = [1, 1]} : vector<24x128xf32> to vector<8x128xf32>
    %221 = arith.addf %219, %220 : vector<8x128xf32>
    %222 = arith.negf %221 : vector<8x128xf32>
    %223 = math.exp %222 : vector<8x128xf32>
    %cst_53 = arith.constant 1.000000e+00 : f32
    %224 = vector.broadcast %cst_53 : f32 to vector<8x128xf32>
    %225 = arith.addf %224, %223 : vector<8x128xf32>
    %226 = arith.divf %224, %225 : vector<8x128xf32>
    %227 = vector.extract_strided_slice %207 {offsets = [16, 0], sizes = [8, 128], strides = [1, 1]} : vector<24x128xf32> to vector<8x128xf32>
    %228 = vector.extract_strided_slice %210 {offsets = [16, 0], sizes = [8, 128], strides = [1, 1]} : vector<24x128xf32> to vector<8x128xf32>
    %229 = arith.mulf %218, %228 : vector<8x128xf32>
    %230 = arith.addf %227, %229 : vector<8x128xf32>
    %231 = math.tanh %230 : vector<8x128xf32>
    %cst_54 = arith.constant 1.000000e+00 : f32
    %232 = vector.broadcast %cst_54 : f32 to vector<8x128xf32>
    %233 = arith.subf %232, %226 : vector<8x128xf32>
    %234 = arith.mulf %233, %231 : vector<8x128xf32>
    %235 = arith.mulf %226, %197 : vector<8x128xf32>
    %236 = arith.addf %234, %235 : vector<8x128xf32>
    %237 = arith.addi %6, %c5_i32 : i32
    %238 = vector.broadcast %237 : i32 to vector<1x128xi32>
    %239 = arith.cmpi eq, %5, %238 : vector<1x128xi32>
    %240 = vector.shape_cast %239 : vector<1x128xi1> to vector<1x128xi1>
    %241 = vector.broadcast %240 : vector<1x128xi1> to vector<8x128xi1>
    %242 = arith.select %241, %236, %203 : vector<8x128xi1>, vector<8x128xf32>
    %c6_i32 = arith.constant 6 : i32
    %243 = arith.index_cast %c6_i32 : i32 to index
    %c0_55 = arith.constant 0 : index
    %c0_56 = arith.constant 0 : index
    %244 = vector.load %arg3[%243, %c0_55, %c0_56] : memref<8x24x128xbf16, #tpu.memory_space<vmem>>, vector<1x24x128xbf16>
    %245 = vector.shape_cast %244 : vector<1x24x128xbf16> to vector<24x128xbf16>
    %246 = arith.extf %245 : vector<24x128xbf16> to vector<24x128xf32>
    %c0_57 = arith.constant 0 : index
    %c0_58 = arith.constant 0 : index
    %247 = vector.load %arg4[%c0_57, %c0_58] : memref<24x8xbf16, #tpu.memory_space<vmem>>, vector<24x8xbf16>
    %248 = arith.truncf %236 : vector<8x128xf32> to vector<8x128xbf16>
    %cst_59 = arith.constant dense<0.000000e+00> : vector<24x128xf32>
    %249 = tpu.matmul %247, %248, %cst_59 {dimension_numbers = #tpu.dot_dimension_numbers<[1], [0], [0], [1], [0, 0, 1, 1], [], []>} : vector<24x8xbf16>, vector<8x128xbf16>, vector<24x128xf32> -> vector<24x128xf32>
    %250 = vector.extract_strided_slice %246 {offsets = [0, 0], sizes = [8, 128], strides = [1, 1]} : vector<24x128xf32> to vector<8x128xf32>
    %251 = vector.extract_strided_slice %249 {offsets = [0, 0], sizes = [8, 128], strides = [1, 1]} : vector<24x128xf32> to vector<8x128xf32>
    %252 = arith.addf %250, %251 : vector<8x128xf32>
    %253 = arith.negf %252 : vector<8x128xf32>
    %254 = math.exp %253 : vector<8x128xf32>
    %cst_60 = arith.constant 1.000000e+00 : f32
    %255 = vector.broadcast %cst_60 : f32 to vector<8x128xf32>
    %256 = arith.addf %255, %254 : vector<8x128xf32>
    %257 = arith.divf %255, %256 : vector<8x128xf32>
    %258 = vector.extract_strided_slice %246 {offsets = [8, 0], sizes = [8, 128], strides = [1, 1]} : vector<24x128xf32> to vector<8x128xf32>
    %259 = vector.extract_strided_slice %249 {offsets = [8, 0], sizes = [8, 128], strides = [1, 1]} : vector<24x128xf32> to vector<8x128xf32>
    %260 = arith.addf %258, %259 : vector<8x128xf32>
    %261 = arith.negf %260 : vector<8x128xf32>
    %262 = math.exp %261 : vector<8x128xf32>
    %cst_61 = arith.constant 1.000000e+00 : f32
    %263 = vector.broadcast %cst_61 : f32 to vector<8x128xf32>
    %264 = arith.addf %263, %262 : vector<8x128xf32>
    %265 = arith.divf %263, %264 : vector<8x128xf32>
    %266 = vector.extract_strided_slice %246 {offsets = [16, 0], sizes = [8, 128], strides = [1, 1]} : vector<24x128xf32> to vector<8x128xf32>
    %267 = vector.extract_strided_slice %249 {offsets = [16, 0], sizes = [8, 128], strides = [1, 1]} : vector<24x128xf32> to vector<8x128xf32>
    %268 = arith.mulf %257, %267 : vector<8x128xf32>
    %269 = arith.addf %266, %268 : vector<8x128xf32>
    %270 = math.tanh %269 : vector<8x128xf32>
    %cst_62 = arith.constant 1.000000e+00 : f32
    %271 = vector.broadcast %cst_62 : f32 to vector<8x128xf32>
    %272 = arith.subf %271, %265 : vector<8x128xf32>
    %273 = arith.mulf %272, %270 : vector<8x128xf32>
    %274 = arith.mulf %265, %236 : vector<8x128xf32>
    %275 = arith.addf %273, %274 : vector<8x128xf32>
    %276 = arith.addi %6, %c6_i32 : i32
    %277 = vector.broadcast %276 : i32 to vector<1x128xi32>
    %278 = arith.cmpi eq, %5, %277 : vector<1x128xi32>
    %279 = vector.shape_cast %278 : vector<1x128xi1> to vector<1x128xi1>
    %280 = vector.broadcast %279 : vector<1x128xi1> to vector<8x128xi1>
    %281 = arith.select %280, %275, %242 : vector<8x128xi1>, vector<8x128xf32>
    %c7_i32 = arith.constant 7 : i32
    %282 = arith.index_cast %c7_i32 : i32 to index
    %c0_63 = arith.constant 0 : index
    %c0_64 = arith.constant 0 : index
    %283 = vector.load %arg3[%282, %c0_63, %c0_64] : memref<8x24x128xbf16, #tpu.memory_space<vmem>>, vector<1x24x128xbf16>
    %284 = vector.shape_cast %283 : vector<1x24x128xbf16> to vector<24x128xbf16>
    %285 = arith.extf %284 : vector<24x128xbf16> to vector<24x128xf32>
    %c0_65 = arith.constant 0 : index
    %c0_66 = arith.constant 0 : index
    %286 = vector.load %arg4[%c0_65, %c0_66] : memref<24x8xbf16, #tpu.memory_space<vmem>>, vector<24x8xbf16>
    %287 = arith.truncf %275 : vector<8x128xf32> to vector<8x128xbf16>
    %cst_67 = arith.constant dense<0.000000e+00> : vector<24x128xf32>
    %288 = tpu.matmul %286, %287, %cst_67 {dimension_numbers = #tpu.dot_dimension_numbers<[1], [0], [0], [1], [0, 0, 1, 1], [], []>} : vector<24x8xbf16>, vector<8x128xbf16>, vector<24x128xf32> -> vector<24x128xf32>
    %289 = vector.extract_strided_slice %285 {offsets = [0, 0], sizes = [8, 128], strides = [1, 1]} : vector<24x128xf32> to vector<8x128xf32>
    %290 = vector.extract_strided_slice %288 {offsets = [0, 0], sizes = [8, 128], strides = [1, 1]} : vector<24x128xf32> to vector<8x128xf32>
    %291 = arith.addf %289, %290 : vector<8x128xf32>
    %292 = arith.negf %291 : vector<8x128xf32>
    %293 = math.exp %292 : vector<8x128xf32>
    %cst_68 = arith.constant 1.000000e+00 : f32
    %294 = vector.broadcast %cst_68 : f32 to vector<8x128xf32>
    %295 = arith.addf %294, %293 : vector<8x128xf32>
    %296 = arith.divf %294, %295 : vector<8x128xf32>
    %297 = vector.extract_strided_slice %285 {offsets = [8, 0], sizes = [8, 128], strides = [1, 1]} : vector<24x128xf32> to vector<8x128xf32>
    %298 = vector.extract_strided_slice %288 {offsets = [8, 0], sizes = [8, 128], strides = [1, 1]} : vector<24x128xf32> to vector<8x128xf32>
    %299 = arith.addf %297, %298 : vector<8x128xf32>
    %300 = arith.negf %299 : vector<8x128xf32>
    %301 = math.exp %300 : vector<8x128xf32>
    %cst_69 = arith.constant 1.000000e+00 : f32
    %302 = vector.broadcast %cst_69 : f32 to vector<8x128xf32>
    %303 = arith.addf %302, %301 : vector<8x128xf32>
    %304 = arith.divf %302, %303 : vector<8x128xf32>
    %305 = vector.extract_strided_slice %285 {offsets = [16, 0], sizes = [8, 128], strides = [1, 1]} : vector<24x128xf32> to vector<8x128xf32>
    %306 = vector.extract_strided_slice %288 {offsets = [16, 0], sizes = [8, 128], strides = [1, 1]} : vector<24x128xf32> to vector<8x128xf32>
    %307 = arith.mulf %296, %306 : vector<8x128xf32>
    %308 = arith.addf %305, %307 : vector<8x128xf32>
    %309 = math.tanh %308 : vector<8x128xf32>
    %cst_70 = arith.constant 1.000000e+00 : f32
    %310 = vector.broadcast %cst_70 : f32 to vector<8x128xf32>
    %311 = arith.subf %310, %304 : vector<8x128xf32>
    %312 = arith.mulf %311, %309 : vector<8x128xf32>
    %313 = arith.mulf %304, %275 : vector<8x128xf32>
    %314 = arith.addf %312, %313 : vector<8x128xf32>
    %315 = arith.addi %6, %c7_i32 : i32
    %316 = vector.broadcast %315 : i32 to vector<1x128xi32>
    %317 = arith.cmpi eq, %5, %316 : vector<1x128xi32>
    %318 = vector.shape_cast %317 : vector<1x128xi1> to vector<1x128xi1>
    %319 = vector.broadcast %318 : vector<1x128xi1> to vector<8x128xi1>
    %320 = arith.select %319, %314, %281 : vector<8x128xi1>, vector<8x128xf32>
    %c8_i32_71 = arith.constant 8 : i32
    %c0_72 = arith.constant 0 : index
    %c0_73 = arith.constant 0 : index
    %321 = vector.load %arg8[%c0_72, %c0_73] : memref<8x128xf32, #tpu.memory_space<vmem>>, vector<8x128xf32>
    tpu.vector_store %arg8[%c0_72, %c0_73], %314 {strides = array<i32>} : memref<8x128xf32, #tpu.memory_space<vmem>>, vector<8x128xf32>,
    %c0_74 = arith.constant 0 : index
    %c0_75 = arith.constant 0 : index
    %322 = vector.load %arg9[%c0_74, %c0_75] : memref<8x128xf32, #tpu.memory_space<vmem>>, vector<8x128xf32>
    tpu.vector_store %arg9[%c0_74, %c0_75], %320 {strides = array<i32>} : memref<8x128xf32, #tpu.memory_space<vmem>>, vector<8x128xf32>,
    %c0_i32_76 = arith.constant 0 : i32
    %323 = arith.cmpi eq, %arg1, %c0_i32_76 : i32
    %324 = arith.extui %323 : i1 to i32
    %c0_i32_77 = arith.constant 0 : i32
    %325 = arith.cmpi ne, %324, %c0_i32_77 : i32
    scf.if %325 {
      %c0_78 = arith.constant 0 : index
      %c0_79 = arith.constant 0 : index
      %326 = vector.load %arg5[%c0_78, %c0_79] : memref<32x8xf32, #tpu.memory_space<vmem>>, vector<32x8xf32>
      %cst_80 = arith.constant dense<0.000000e+00> : vector<32x128xf32>
      %327 = tpu.matmul %326, %320, %cst_80 {dimension_numbers = #tpu.dot_dimension_numbers<[1], [0], [0], [1], [0, 0, 1, 1], [], []>} : vector<32x8xf32>, vector<8x128xf32>, vector<32x128xf32> -> vector<32x128xf32>
      %c0_81 = arith.constant 0 : index
      %c0_82 = arith.constant 0 : index
      %328 = vector.load %arg6[%c0_81, %c0_82] : memref<32x1xf32, #tpu.memory_space<vmem>>, vector<32x1xf32>
      %329 = vector.broadcast %328 : vector<32x1xf32> to vector<32x128xf32>
      %330 = arith.addf %327, %329 : vector<32x128xf32>
      %c0_83 = arith.constant 0 : index
      %c0_84 = arith.constant 0 : index
      %331 = vector.load %arg7[%c0_83, %c0_84] : memref<32x128xf32, #tpu.memory_space<vmem>>, vector<32x128xf32>
      tpu.vector_store %arg7[%c0_83, %c0_84], %330 {strides = array<i32>} : memref<32x128xf32, #tpu.memory_space<vmem>>, vector<32x128xf32>,
    } else {
    }
    return
  }
  func.func @transform_0(%arg0: i32, %arg1: i32) -> (i32, i32) {
    %c0_i32 = arith.constant 0 : i32
    %c0_i32_0 = arith.constant 0 : i32
    return %c0_i32, %arg0 : i32, i32
  }
  func.func @transform_1(%arg0: i32, %arg1: i32) -> (i32, i32, i32) {
    %c0_i32 = arith.constant 0 : i32
    %c0_i32_0 = arith.constant 0 : i32
    return %arg1, %c0_i32, %arg0 : i32, i32, i32
  }
  func.func @transform_2(%arg0: i32, %arg1: i32) -> (i32, i32) {
    %c0_i32 = arith.constant 0 : i32
    %c0_i32_0 = arith.constant 0 : i32
    %c0_i32_1 = arith.constant 0 : i32
    return %c0_i32, %c0_i32_0 : i32, i32
  }
  func.func @transform_3(%arg0: i32, %arg1: i32) -> (i32, i32) {
    %c0_i32 = arith.constant 0 : i32
    %c0_i32_0 = arith.constant 0 : i32
    %c0_i32_1 = arith.constant 0 : i32
    return %c0_i32, %c0_i32_0 : i32, i32
  }
  func.func @transform_4(%arg0: i32, %arg1: i32) -> (i32, i32) {
    %c0_i32 = arith.constant 0 : i32
    %c0_i32_0 = arith.constant 0 : i32
    %c0_i32_1 = arith.constant 0 : i32
    return %c0_i32, %c0_i32_0 : i32, i32
  }
  func.func @transform_5(%arg0: i32, %arg1: i32) -> (i32, i32) {
    %c0_i32 = arith.constant 0 : i32
    %c0_i32_0 = arith.constant 0 : i32
    return %c0_i32, %arg0 : i32, i32
  }
}

</mosaic_0001>

<llo_original>
// kernel: user_encoder_forward.1
$region0: #{user_encoder_forward.1}
  #allocation0 [shape = 'u32[]', space=smem, size = 0x4, offset = 0x4, fixed_abs, tag = 'smem constant byte address 0x4 - core index']
  #allocation1 [shape = 'u32[72,128]{1,0:T(1,128)}', space=vmem, size = 0x9000, scoped, tag = 'internal scratch']
  #allocation2 [shape = 'f32[8,128]{1,0:T(8,128)}', space=vmem, size = 0x1000, scoped, tag = 'scratch operand']
  #allocation3 [shape = 'f32[8,128]{1,0:T(8,128)}', space=vmem, size = 0x1000, scoped, tag = 'scratch operand']
  %s0 = inlined_call_operand.vmem [shape: s32[1,128], index: 0, kind: input, shape index: {}]
  %s1 = inlined_call_operand.vmem [shape: bf16[8,24,128], index: 1, kind: input, shape index: {}]
  %s2 = inlined_call_operand.vmem [shape: bf16[24,8], index: 2, kind: input, shape index: {}]
  %s3 = inlined_call_operand.vmem [shape: f32[32,8], index: 3, kind: input, shape index: {}]
  %s4 = inlined_call_operand.vmem [shape: f32[32,1], index: 4, kind: input, shape index: {}]
  %s5 = inlined_call_operand.vmem [shape: f32[32,128], index: 5, kind: output, shape index: {}]
  %s6 = sld [smem:[#allocation0]]
  $region38: #{user_encoder_forward.1} parent=0
    _
  %s8 = ssub.s32 1, %s6
  %s9 = scalar_select 0, %s8, %s6
  // Predicated region
  $region2: #{user_encoder_forward.1} parent=0 // pred_check
    _
  $region3: #{user_encoder_forward.1} parent=0 // pred_check_branch
    %11 = sbr.rel (0) target = $region5
  $region4: #{user_encoder_forward.1} parent=0 // pred_region
    _
  $region5: #{user_encoder_forward.1} parent=0 // pred_fallthru
    _
  // Predicated region
  $region6: #{user_encoder_forward.1} parent=0 // pred_check
    _
  $region7: #{user_encoder_forward.1} parent=0 // pred_check_branch
    %13 = sbr.rel (0) target = $region9
  $region8: #{user_encoder_forward.1} parent=0 // pred_region
    _
  $region9: #{user_encoder_forward.1} parent=0 // pred_fallthru
    _
  // Predicated region
  $region10: #{user_encoder_forward.1} parent=0 // pred_check
    _
  $region11: #{user_encoder_forward.1} parent=0 // pred_check_branch
    %15 = sbr.rel (0) target = $region13
  $region12: #{user_encoder_forward.1} parent=0 // pred_region
    _
  $region13: #{user_encoder_forward.1} parent=0 // pred_fallthru
    _
  // Predicated region
  $region14: #{user_encoder_forward.1} parent=0 // pred_check
    _
  $region15: #{user_encoder_forward.1} parent=0 // pred_check_branch
    %17 = sbr.rel (0) target = $region17
  $region16: #{user_encoder_forward.1} parent=0 // pred_region
    _
  $region17: #{user_encoder_forward.1} parent=0 // pred_fallthru
    _
  // Predicated region
  $region18: #{user_encoder_forward.1} parent=0 // pred_check
    _
  $region19: #{user_encoder_forward.1} parent=0 // pred_check_branch
    %19 = sbr.rel (0) target = $region21
  $region20: #{user_encoder_forward.1} parent=0 // pred_region
    _
  $region21: #{user_encoder_forward.1} parent=0 // pred_fallthru
    _
  %p21 = scmp.eq.s32.totalorder 0, 0
  // Predicated region
  $region22: #{user_encoder_forward.1} parent=0 // pred_check
    %p22 = pneg %p21
  $region23: #{user_encoder_forward.1} parent=0 // pred_check_branch
    %24 = sbr.rel (%p22) target = $region25
  $region24: #{user_encoder_forward.1} parent=0 // pred_region
    %25 = vst [vmem:[#allocation2] sm:$0xff] 0.0
    %26 = vst [vmem:[#allocation3] sm:$0xff] 0.0
  $region25: #{user_encoder_forward.1} parent=0 // pred_fallthru
    _
  %v27 = vld [vmem:[%s0] sm:$0x1]
  %v28 = vsub.s32 %v27, 1
  %s29 = smul.u32 0, 8
  %v30 = vld [vmem:[#allocation2] sm:$0xff]
  %v31 = vld [vmem:[#allocation3] sm:$0xff]
  %v32 = vld [vmem:[%s1] sm:$0xf]
  %v33 = vld [vmem:[%s1 + $0x4] sm:$0xf]
  %v34 = vld [vmem:[%s1 + $0x8] sm:$0xf]
  %v35 = vunpack.c.l.bf16 %v32
  %v36 = vunpack.c.l.bf16 %v33
  %v37 = vunpack.c.l.bf16 %v34
  %v38 = vld [vmem:[%s2] sm:$0xf]
  %v39 = vld [vmem:[%s2 + $0x4] sm:$0xf]
  %v40 = vld [vmem:[%s2 + $0x8] sm:$0xf]
  %v41 = vpack.c.bf16 %v30, %v30
  %v45 = vunpack.c.l.b16 %v38
  %v46 = vunpack.c.l.b16 %v39
  %v47 = vunpack.c.l.b16 %v40
  %v48 = vpack.c.b16 %v46, %v45
  %v49 = vpack.c.b16 %v47, %v47
  %vm50 = vcmask 64512
  %v52 = vsel %vm50, %v48, 0
  %v55 = vsel %vm50, %v49, 0
  %vm57 = vcmask 1043456
  %v59 = vsel %vm57, %v41, 0
  %61 = vmatpush.bf16.msra.mxu0 0
  %62 = vmatpush.bf16.msra.mxu0 0
  %63 = vmatpush.bf16.msra.mxu0 0
  %64 = vmatpush.bf16.msra.mxu0 0
  %65 = vmatpush.bf16.msra.mxu0 0
  %66 = vmatpush.bf16.msra.mxu0 0
  %67 = vmatpush.bf16.msra.mxu0 0
  %68 = vmatpush.bf16.msra.mxu0 %v59
  %69 = vmatmul.bf16.gmra.mxu0 %v52
  %v70 = vpop.f32.mrf.mxu0
  %v71 = vadd.f32 0.0, %v70
  %v72 = vpop.f32.mrf.mxu0
  %v73 = vadd.f32 0.0, %v72
  %74 = vmatmul.bf16.gmra.mxu0 %v55
  %v75 = vpop.f32.mrf.mxu0
  %v76 = vadd.f32 0.0, %v75
  %v77 = vpop.f32.mrf.mxu0
  %78 = vdwg.mxu0
  %v79 = vadd.f32 %v35, %v71
  %v80 = vxor.u32 %v79, 2147483648
  %v81 = vmul.f32 %v80, 1.442695
  %v82 = vpow.pop %v81
  %v83 = vadd.f32 %v82, 1.0
  %v84 = vrcp.pop %v83
  %v85 = vmul.f32 %v83, %v84
  %v86 = vsub.f32 1.0, %v85
  %v87 = vmul.f32 %v84, %v86
  %v88 = vadd.f32 %v84, %v87
  %vm89 = vweird.f32 %v83
  %vm90 = vweird.f32 %v84
  %vm91 = vmor %vm89, %vm90
  %v92 = vsel %vm91, %v84, %v88
  %v93 = vand.u32 2147483647, %v83
  %vm94 = vcmp.eq.f32.partialorder %v93, 8.507059e+37
  %v95 = vand.u32 %v83, 2147483648
  %v96 = vor.u32 1.1754944e-38, %v95
  %v97 = vsel %vm94, %v96, %v92
  %v98 = vmul.f32 1.0, %v97
  %v99 = vadd.f32 %v36, %v73
  %v100 = vxor.u32 %v99, 2147483648
  %v101 = vmul.f32 %v100, 1.442695
  %v102 = vpow.pop %v101
  %v103 = vadd.f32 %v102, 1.0
  %v104 = vrcp.pop %v103
  %v105 = vmul.f32 %v103, %v104
  %v106 = vsub.f32 1.0, %v105
  %v107 = vmul.f32 %v104, %v106
  %v108 = vadd.f32 %v104, %v107
  %vm109 = vweird.f32 %v103
  %vm110 = vweird.f32 %v104
  %vm111 = vmor %vm109, %vm110
  %v112 = vsel %vm111, %v104, %v108
  %v113 = vand.u32 2147483647, %v103
  %vm114 = vcmp.eq.f32.partialorder %v113, 8.507059e+37
  %v115 = vand.u32 %v103, 2147483648
  %v116 = vor.u32 1.1754944e-38, %v115
  %v117 = vsel %vm114, %v116, %v112
  %v118 = vmul.f32 1.0, %v117
  %v119 = vmul.f32 %v98, %v76
  %v120 = vadd.f32 %v37, %v119
  %v121 = vtanh.pop %v120
  %v122 = vsub.f32 1.0, %v118
  %v123 = vmul.f32 %v122, %v121
  %v124 = vmul.f32 %v118, %v30
  %v125 = vadd.f32 %v123, %v124
  %v126 = vstv %s29
  %vm127 = vcmp.eq.s32.totalorder %v28, %v126
  %v128 = vsel %vm127, 1, 0
  %v129 = vperm.slane %v128, 0
  %vm130 = vcmp.eq.s32.totalorder %v129, 1
  %v131 = vsel %vm130, %v125, %v31
  %s132 = scalar_lea.vmem %s1, 12
  %v133 = vld [vmem:[%s132] sm:$0xf]
  %v134 = vld [vmem:[%s132 + $0x4] sm:$0xf]
  %v135 = vld [vmem:[%s132 + $0x8] sm:$0xf]
  %v136 = vunpack.c.l.bf16 %v133
  %v137 = vunpack.c.l.bf16 %v134
  %v138 = vunpack.c.l.bf16 %v135
  %v139 = vpack.c.bf16 %v125, %v125
  %v141 = vsel %vm57, %v139, 0
  %143 = vmatpush.bf16.msra.mxu0 0
  %144 = vmatpush.bf16.msra.mxu0 0
  %145 = vmatpush.bf16.msra.mxu0 0
  %146 = vmatpush.bf16.msra.mxu0 0
  %147 = vmatpush.bf16.msra.mxu0 0
  %148 = vmatpush.bf16.msra.mxu0 0
  %149 = vmatpush.bf16.msra.mxu0 0
  %150 = vmatpush.bf16.msra.mxu0 %v141
  %151 = vmatmul.bf16.gmra.mxu0 %v52
  %v152 = vpop.f32.mrf.mxu0
  %v153 = vadd.f32 0.0, %v152
  %v154 = vpop.f32.mrf.mxu0
  %v155 = vadd.f32 0.0, %v154
  %156 = vmatmul.bf16.gmra.mxu0 %v55
  %v157 = vpop.f32.mrf.mxu0
  %v158 = vadd.f32 0.0, %v157
  %v159 = vpop.f32.mrf.mxu0
  %160 = vdwg.mxu0
  %v161 = vadd.f32 %v136, %v153
  %v162 = vxor.u32 %v161, 2147483648
  %v163 = vmul.f32 %v162, 1.442695
  %v164 = vpow.pop %v163
  %v165 = vadd.f32 %v164, 1.0
  %v166 = vrcp.pop %v165
  %v167 = vmul.f32 %v165, %v166
  %v168 = vsub.f32 1.0, %v167
  %v169 = vmul.f32 %v166, %v168
  %v170 = vadd.f32 %v166, %v169
  %vm171 = vweird.f32 %v165
  %vm172 = vweird.f32 %v166
  %vm173 = vmor %vm171, %vm172
  %v174 = vsel %vm173, %v166, %v170
  %v175 = vand.u32 2147483647, %v165
  %vm176 = vcmp.eq.f32.partialorder %v175, 8.507059e+37
  %v177 = vand.u32 %v165, 2147483648
  %v178 = vor.u32 1.1754944e-38, %v177
  %v179 = vsel %vm176, %v178, %v174
  %v180 = vmul.f32 1.0, %v179
  %v181 = vadd.f32 %v137, %v155
  %v182 = vxor.u32 %v181, 2147483648
  %v183 = vmul.f32 %v182, 1.442695
  %v184 = vpow.pop %v183
  %v185 = vadd.f32 %v184, 1.0
  %v186 = vrcp.pop %v185
  %v187 = vmul.f32 %v185, %v186
  %v188 = vsub.f32 1.0, %v187
  %v189 = vmul.f32 %v186, %v188
  %v190 = vadd.f32 %v186, %v189
  %vm191 = vweird.f32 %v185
  %vm192 = vweird.f32 %v186
  %vm193 = vmor %vm191, %vm192
  %v194 = vsel %vm193, %v186, %v190
  %v195 = vand.u32 2147483647, %v185
  %vm196 = vcmp.eq.f32.partialorder %v195, 8.507059e+37
  %v197 = vand.u32 %v185, 2147483648
  %v198 = vor.u32 1.1754944e-38, %v197
  %v199 = vsel %vm196, %v198, %v194
  %v200 = vmul.f32 1.0, %v199
  %v201 = vmul.f32 %v180, %v158
  %v202 = vadd.f32 %v138, %v201
  %v203 = vtanh.pop %v202
  %v204 = vsub.f32 1.0, %v200
  %v205 = vmul.f32 %v204, %v203
  %v206 = vmul.f32 %v200, %v125
  %v207 = vadd.f32 %v205, %v206
  %s208 = sadd.s32 %s29, 1
  %v209 = vstv %s208
  %vm210 = vcmp.eq.s32.totalorder %v28, %v209
  %v211 = vsel %vm210, 1, 0
  %v212 = vperm.slane %v211, 0
  %vm213 = vcmp.eq.s32.totalorder %v212, 1
  %v214 = vsel %vm213, %v207, %v131
  %s215 = scalar_lea.vmem %s1, 24
  %v216 = vld [vmem:[%s215] sm:$0xf]
  %v217 = vld [vmem:[%s215 + $0x4] sm:$0xf]
  %v218 = vld [vmem:[%s215 + $0x8] sm:$0xf]
  %v219 = vunpack.c.l.bf16 %v216
  %v220 = vunpack.c.l.bf16 %v217
  %v221 = vunpack.c.l.bf16 %v218
  %v222 = vpack.c.bf16 %v207, %v207
  %v224 = vsel %vm57, %v222, 0
  %226 = vmatpush.bf16.msra.mxu0 0
  %227 = vmatpush.bf16.msra.mxu0 0
  %228 = vmatpush.bf16.msra.mxu0 0
  %229 = vmatpush.bf16.msra.mxu0 0
  %230 = vmatpush.bf16.msra.mxu0 0
  %231 = vmatpush.bf16.msra.mxu0 0
  %232 = vmatpush.bf16.msra.mxu0 0
  %233 = vmatpush.bf16.msra.mxu0 %v224
  %234 = vmatmul.bf16.gmra.mxu0 %v52
  %v235 = vpop.f32.mrf.mxu0
  %v236 = vadd.f32 0.0, %v235
  %v237 = vpop.f32.mrf.mxu0
  %v238 = vadd.f32 0.0, %v237
  %239 = vmatmul.bf16.gmra.mxu0 %v55
  %v240 = vpop.f32.mrf.mxu0
  %v241 = vadd.f32 0.0, %v240
  %v242 = vpop.f32.mrf.mxu0
  %243 = vdwg.mxu0
  %v244 = vadd.f32 %v219, %v236
  %v245 = vxor.u32 %v244, 2147483648
  %v246 = vmul.f32 %v245, 1.442695
  %v247 = vpow.pop %v246
  %v248 = vadd.f32 %v247, 1.0
  %v249 = vrcp.pop %v248
  %v250 = vmul.f32 %v248, %v249
  %v251 = vsub.f32 1.0, %v250
  %v252 = vmul.f32 %v249, %v251
  %v253 = vadd.f32 %v249, %v252
  %vm254 = vweird.f32 %v248
  %vm255 = vweird.f32 %v249
  %vm256 = vmor %vm254, %vm255
  %v257 = vsel %vm256, %v249, %v253
  %v258 = vand.u32 2147483647, %v248
  %vm259 = vcmp.eq.f32.partialorder %v258, 8.507059e+37
  %v260 = vand.u32 %v248, 2147483648
  %v261 = vor.u32 1.1754944e-38, %v260
  %v262 = vsel %vm259, %v261, %v257
  %v263 = vmul.f32 1.0, %v262
  %v264 = vadd.f32 %v220, %v238
  %v265 = vxor.u32 %v264, 2147483648
  %v266 = vmul.f32 %v265, 1.442695
  %v267 = vpow.pop %v266
  %v268 = vadd.f32 %v267, 1.0
  %v269 = vrcp.pop %v268
  %v270 = vmul.f32 %v268, %v269
  %v271 = vsub.f32 1.0, %v270
  %v272 = vmul.f32 %v269, %v271
  %v273 = vadd.f32 %v269, %v272
  %vm274 = vweird.f32 %v268
  %vm275 = vweird.f32 %v269
  %vm276 = vmor %vm274, %vm275
  %v277 = vsel %vm276, %v269, %v273
  %v278 = vand.u32 2147483647, %v268
  %vm279 = vcmp.eq.f32.partialorder %v278, 8.507059e+37
  %v280 = vand.u32 %v268, 2147483648
  %v281 = vor.u32 1.1754944e-38, %v280
  %v282 = vsel %vm279, %v281, %v277
  %v283 = vmul.f32 1.0, %v282
  %v284 = vmul.f32 %v263, %v241
  %v285 = vadd.f32 %v221, %v284
  %v286 = vtanh.pop %v285
  %v287 = vsub.f32 1.0, %v283
  %v288 = vmul.f32 %v287, %v286
  %v289 = vmul.f32 %v283, %v207
  %v290 = vadd.f32 %v288, %v289
  %s291 = sadd.s32 %s29, 2
  %v292 = vstv %s291
  %vm293 = vcmp.eq.s32.totalorder %v28, %v292
  %v294 = vsel %vm293, 1, 0
  %v295 = vperm.slane %v294, 0
  %vm296 = vcmp.eq.s32.totalorder %v295, 1
  %v297 = vsel %vm296, %v290, %v214
  %s298 = scalar_lea.vmem %s1, 36
  %v299 = vld [vmem:[%s298] sm:$0xf]
  %v300 = vld [vmem:[%s298 + $0x4] sm:$0xf]
  %v301 = vld [vmem:[%s298 + $0x8] sm:$0xf]
  %v302 = vunpack.c.l.bf16 %v299
  %v303 = vunpack.c.l.bf16 %v300
  %v304 = vunpack.c.l.bf16 %v301
  %v305 = vpack.c.bf16 %v290, %v290
  %v307 = vsel %vm57, %v305, 0
  %309 = vmatpush.bf16.msra.mxu0 0
  %310 = vmatpush.bf16.msra.mxu0 0
  %311 = vmatpush.bf16.msra.mxu0 0
  %312 = vmatpush.bf16.msra.mxu0 0
  %313 = vmatpush.bf16.msra.mxu0 0
  %314 = vmatpush.bf16.msra.mxu0 0
  %315 = vmatpush.bf16.msra.mxu0 0
  %316 = vmatpush.bf16.msra.mxu0 %v307
  %317 = vmatmul.bf16.gmra.mxu0 %v52
  %v318 = vpop.f32.mrf.mxu0
  %v319 = vadd.f32 0.0, %v318
  %v320 = vpop.f32.mrf.mxu0
  %v321 = vadd.f32 0.0, %v320
  %322 = vmatmul.bf16.gmra.mxu0 %v55
  %v323 = vpop.f32.mrf.mxu0
  %v324 = vadd.f32 0.0, %v323
  %v325 = vpop.f32.mrf.mxu0
  %326 = vdwg.mxu0
  %v327 = vadd.f32 %v302, %v319
  %v328 = vxor.u32 %v327, 2147483648
  %v329 = vmul.f32 %v328, 1.442695
  %v330 = vpow.pop %v329
  %v331 = vadd.f32 %v330, 1.0
  %v332 = vrcp.pop %v331
  %v333 = vmul.f32 %v331, %v332
  %v334 = vsub.f32 1.0, %v333
  %v335 = vmul.f32 %v332, %v334
  %v336 = vadd.f32 %v332, %v335
  %vm337 = vweird.f32 %v331
  %vm338 = vweird.f32 %v332
  %vm339 = vmor %vm337, %vm338
  %v340 = vsel %vm339, %v332, %v336
  %v341 = vand.u32 2147483647, %v331
  %vm342 = vcmp.eq.f32.partialorder %v341, 8.507059e+37
  %v343 = vand.u32 %v331, 2147483648
  %v344 = vor.u32 1.1754944e-38, %v343
  %v345 = vsel %vm342, %v344, %v340
  %v346 = vmul.f32 1.0, %v345
  %v347 = vadd.f32 %v303, %v321
  %v348 = vxor.u32 %v347, 2147483648
  %v349 = vmul.f32 %v348, 1.442695
  %v350 = vpow.pop %v349
  %v351 = vadd.f32 %v350, 1.0
  %v352 = vrcp.pop %v351
  %v353 = vmul.f32 %v351, %v352
  %v354 = vsub.f32 1.0, %v353
  %v355 = vmul.f32 %v352, %v354
  %v356 = vadd.f32 %v352, %v355
  %vm357 = vweird.f32 %v351
  %vm358 = vweird.f32 %v352
  %vm359 = vmor %vm357, %vm358
  %v360 = vsel %vm359, %v352, %v356
  %v361 = vand.u32 2147483647, %v351
  %vm362 = vcmp.eq.f32.partialorder %v361, 8.507059e+37
  %v363 = vand.u32 %v351, 2147483648
  %v364 = vor.u32 1.1754944e-38, %v363
  %v365 = vsel %vm362, %v364, %v360
  %v366 = vmul.f32 1.0, %v365
  %v367 = vmul.f32 %v346, %v324
  %v368 = vadd.f32 %v304, %v367
  %v369 = vtanh.pop %v368
  %v370 = vsub.f32 1.0, %v366
  %v371 = vmul.f32 %v370, %v369
  %v372 = vmul.f32 %v366, %v290
  %v373 = vadd.f32 %v371, %v372
  %s374 = sadd.s32 %s29, 3
  %v375 = vstv %s374
  %vm376 = vcmp.eq.s32.totalorder %v28, %v375
  %v377 = vsel %vm376, 1, 0
  %v378 = vperm.slane %v377, 0
  %vm379 = vcmp.eq.s32.totalorder %v378, 1
  %v380 = vsel %vm379, %v373, %v297
  %s381 = scalar_lea.vmem %s1, 48
  %v382 = vld [vmem:[%s381] sm:$0xf]
  %v383 = vld [vmem:[%s381 + $0x4] sm:$0xf]
  %v384 = vld [vmem:[%s381 + $0x8] sm:$0xf]
  %v385 = vunpack.c.l.bf16 %v382
  %v386 = vunpack.c.l.bf16 %v383
  %v387 = vunpack.c.l.bf16 %v384
  %v388 = vpack.c.bf16 %v373, %v373
  %v390 = vsel %vm57, %v388, 0
  %392 = vmatpush.bf16.msra.mxu0 0
  %393 = vmatpush.bf16.msra.mxu0 0
  %394 = vmatpush.bf16.msra.mxu0 0
  %395 = vmatpush.bf16.msra.mxu0 0
  %396 = vmatpush.bf16.msra.mxu0 0
  %397 = vmatpush.bf16.msra.mxu0 0
  %398 = vmatpush.bf16.msra.mxu0 0
  %399 = vmatpush.bf16.msra.mxu0 %v390
  %400 = vmatmul.bf16.gmra.mxu0 %v52
  %v401 = vpop.f32.mrf.mxu0
  %v402 = vadd.f32 0.0, %v401
  %v403 = vpop.f32.mrf.mxu0
  %v404 = vadd.f32 0.0, %v403
  %405 = vmatmul.bf16.gmra.mxu0 %v55
  %v406 = vpop.f32.mrf.mxu0
  %v407 = vadd.f32 0.0, %v406
  %v408 = vpop.f32.mrf.mxu0
  %409 = vdwg.mxu0
  %v410 = vadd.f32 %v385, %v402
  %v411 = vxor.u32 %v410, 2147483648
  %v412 = vmul.f32 %v411, 1.442695
  %v413 = vpow.pop %v412
  %v414 = vadd.f32 %v413, 1.0
  %v415 = vrcp.pop %v414
  %v416 = vmul.f32 %v414, %v415
  %v417 = vsub.f32 1.0, %v416
  %v418 = vmul.f32 %v415, %v417
  %v419 = vadd.f32 %v415, %v418
  %vm420 = vweird.f32 %v414
  %vm421 = vweird.f32 %v415
  %vm422 = vmor %vm420, %vm421
  %v423 = vsel %vm422, %v415, %v419
  %v424 = vand.u32 2147483647, %v414
  %vm425 = vcmp.eq.f32.partialorder %v424, 8.507059e+37
  %v426 = vand.u32 %v414, 2147483648
  %v427 = vor.u32 1.1754944e-38, %v426
  %v428 = vsel %vm425, %v427, %v423
  %v429 = vmul.f32 1.0, %v428
  %v430 = vadd.f32 %v386, %v404
  %v431 = vxor.u32 %v430, 2147483648
  %v432 = vmul.f32 %v431, 1.442695
  %v433 = vpow.pop %v432
  %v434 = vadd.f32 %v433, 1.0
  %v435 = vrcp.pop %v434
  %v436 = vmul.f32 %v434, %v435
  %v437 = vsub.f32 1.0, %v436
  %v438 = vmul.f32 %v435, %v437
  %v439 = vadd.f32 %v435, %v438
  %vm440 = vweird.f32 %v434
  %vm441 = vweird.f32 %v435
  %vm442 = vmor %vm440, %vm441
  %v443 = vsel %vm442, %v435, %v439
  %v444 = vand.u32 2147483647, %v434
  %vm445 = vcmp.eq.f32.partialorder %v444, 8.507059e+37
  %v446 = vand.u32 %v434, 2147483648
  %v447 = vor.u32 1.1754944e-38, %v446
  %v448 = vsel %vm445, %v447, %v443
  %v449 = vmul.f32 1.0, %v448
  %v450 = vmul.f32 %v429, %v407
  %v451 = vadd.f32 %v387, %v450
  %v452 = vtanh.pop %v451
  %v453 = vsub.f32 1.0, %v449
  %v454 = vmul.f32 %v453, %v452
  %v455 = vmul.f32 %v449, %v373
  %v456 = vadd.f32 %v454, %v455
  %s457 = sadd.s32 %s29, 4
  %v458 = vstv %s457
  %vm459 = vcmp.eq.s32.totalorder %v28, %v458
  %v460 = vsel %vm459, 1, 0
  %v461 = vperm.slane %v460, 0
  %vm462 = vcmp.eq.s32.totalorder %v461, 1
  %v463 = vsel %vm462, %v456, %v380
  %s464 = scalar_lea.vmem %s1, 60
  %v465 = vld [vmem:[%s464] sm:$0xf]
  %v466 = vld [vmem:[%s464 + $0x4] sm:$0xf]
  %v467 = vld [vmem:[%s464 + $0x8] sm:$0xf]
  %v468 = vunpack.c.l.bf16 %v465
  %v469 = vunpack.c.l.bf16 %v466
  %v470 = vunpack.c.l.bf16 %v467
  %v471 = vpack.c.bf16 %v456, %v456
  %v473 = vsel %vm57, %v471, 0
  %475 = vmatpush.bf16.msra.mxu0 0
  %476 = vmatpush.bf16.msra.mxu0 0
  %477 = vmatpush.bf16.msra.mxu0 0
  %478 = vmatpush.bf16.msra.mxu0 0
  %479 = vmatpush.bf16.msra.mxu0 0
  %480 = vmatpush.bf16.msra.mxu0 0
  %481 = vmatpush.bf16.msra.mxu0 0
  %482 = vmatpush.bf16.msra.mxu0 %v473
  %483 = vmatmul.bf16.gmra.mxu0 %v52
  %v484 = vpop.f32.mrf.mxu0
  %v485 = vadd.f32 0.0, %v484
  %v486 = vpop.f32.mrf.mxu0
  %v487 = vadd.f32 0.0, %v486
  %488 = vmatmul.bf16.gmra.mxu0 %v55
  %v489 = vpop.f32.mrf.mxu0
  %v490 = vadd.f32 0.0, %v489
  %v491 = vpop.f32.mrf.mxu0
  %492 = vdwg.mxu0
  %v493 = vadd.f32 %v468, %v485
  %v494 = vxor.u32 %v493, 2147483648
  %v495 = vmul.f32 %v494, 1.442695
  %v496 = vpow.pop %v495
  %v497 = vadd.f32 %v496, 1.0
  %v498 = vrcp.pop %v497
  %v499 = vmul.f32 %v497, %v498
  %v500 = vsub.f32 1.0, %v499
  %v501 = vmul.f32 %v498, %v500
  %v502 = vadd.f32 %v498, %v501
  %vm503 = vweird.f32 %v497
  %vm504 = vweird.f32 %v498
  %vm505 = vmor %vm503, %vm504
  %v506 = vsel %vm505, %v498, %v502
  %v507 = vand.u32 2147483647, %v497
  %vm508 = vcmp.eq.f32.partialorder %v507, 8.507059e+37
  %v509 = vand.u32 %v497, 2147483648
  %v510 = vor.u32 1.1754944e-38, %v509
  %v511 = vsel %vm508, %v510, %v506
  %v512 = vmul.f32 1.0, %v511
  %v513 = vadd.f32 %v469, %v487
  %v514 = vxor.u32 %v513, 2147483648
  %v515 = vmul.f32 %v514, 1.442695
  %v516 = vpow.pop %v515
  %v517 = vadd.f32 %v516, 1.0
  %v518 = vrcp.pop %v517
  %v519 = vmul.f32 %v517, %v518
  %v520 = vsub.f32 1.0, %v519
  %v521 = vmul.f32 %v518, %v520
  %v522 = vadd.f32 %v518, %v521
  %vm523 = vweird.f32 %v517
  %vm524 = vweird.f32 %v518
  %vm525 = vmor %vm523, %vm524
  %v526 = vsel %vm525, %v518, %v522
  %v527 = vand.u32 2147483647, %v517
  %vm528 = vcmp.eq.f32.partialorder %v527, 8.507059e+37
  %v529 = vand.u32 %v517, 2147483648
  %v530 = vor.u32 1.1754944e-38, %v529
  %v531 = vsel %vm528, %v530, %v526
  %v532 = vmul.f32 1.0, %v531
  %v533 = vmul.f32 %v512, %v490
  %v534 = vadd.f32 %v470, %v533
  %v535 = vtanh.pop %v534
  %v536 = vsub.f32 1.0, %v532
  %v537 = vmul.f32 %v536, %v535
  %v538 = vmul.f32 %v532, %v456
  %v539 = vadd.f32 %v537, %v538
  %s540 = sadd.s32 %s29, 5
  %v541 = vstv %s540
  %vm542 = vcmp.eq.s32.totalorder %v28, %v541
  %v543 = vsel %vm542, 1, 0
  %v544 = vperm.slane %v543, 0
  %vm545 = vcmp.eq.s32.totalorder %v544, 1
  %v546 = vsel %vm545, %v539, %v463
  %s547 = scalar_lea.vmem %s1, 72
  %v548 = vld [vmem:[%s547] sm:$0xf]
  %v549 = vld [vmem:[%s547 + $0x4] sm:$0xf]
  %v550 = vld [vmem:[%s547 + $0x8] sm:$0xf]
  %v551 = vunpack.c.l.bf16 %v548
  %v552 = vunpack.c.l.bf16 %v549
  %v553 = vunpack.c.l.bf16 %v550
  %v554 = vpack.c.bf16 %v539, %v539
  %v556 = vsel %vm57, %v554, 0
  %558 = vmatpush.bf16.msra.mxu0 0
  %559 = vmatpush.bf16.msra.mxu0 0
  %560 = vmatpush.bf16.msra.mxu0 0
  %561 = vmatpush.bf16.msra.mxu0 0
  %562 = vmatpush.bf16.msra.mxu0 0
  %563 = vmatpush.bf16.msra.mxu0 0
  %564 = vmatpush.bf16.msra.mxu0 0
  %565 = vmatpush.bf16.msra.mxu0 %v556
  %566 = vmatmul.bf16.gmra.mxu0 %v52
  %v567 = vpop.f32.mrf.mxu0
  %v568 = vadd.f32 0.0, %v567
  %v569 = vpop.f32.mrf.mxu0
  %v570 = vadd.f32 0.0, %v569
  %571 = vmatmul.bf16.gmra.mxu0 %v55
  %v572 = vpop.f32.mrf.mxu0
  %v573 = vadd.f32 0.0, %v572
  %v574 = vpop.f32.mrf.mxu0
  %575 = vdwg.mxu0
  %v576 = vadd.f32 %v551, %v568
  %v577 = vxor.u32 %v576, 2147483648
  %v578 = vmul.f32 %v577, 1.442695
  %v579 = vpow.pop %v578
  %v580 = vadd.f32 %v579, 1.0
  %v581 = vrcp.pop %v580
  %v582 = vmul.f32 %v580, %v581
  %v583 = vsub.f32 1.0, %v582
  %v584 = vmul.f32 %v581, %v583
  %v585 = vadd.f32 %v581, %v584
  %vm586 = vweird.f32 %v580
  %vm587 = vweird.f32 %v581
  %vm588 = vmor %vm586, %vm587
  %v589 = vsel %vm588, %v581, %v585
  %v590 = vand.u32 2147483647, %v580
  %vm591 = vcmp.eq.f32.partialorder %v590, 8.507059e+37
  %v592 = vand.u32 %v580, 2147483648
  %v593 = vor.u32 1.1754944e-38, %v592
  %v594 = vsel %vm591, %v593, %v589
  %v595 = vmul.f32 1.0, %v594
  %v596 = vadd.f32 %v552, %v570
  %v597 = vxor.u32 %v596, 2147483648
  %v598 = vmul.f32 %v597, 1.442695
  %v599 = vpow.pop %v598
  %v600 = vadd.f32 %v599, 1.0
  %v601 = vrcp.pop %v600
  %v602 = vmul.f32 %v600, %v601
  %v603 = vsub.f32 1.0, %v602
  %v604 = vmul.f32 %v601, %v603
  %v605 = vadd.f32 %v601, %v604
  %vm606 = vweird.f32 %v600
  %vm607 = vweird.f32 %v601
  %vm608 = vmor %vm606, %vm607
  %v609 = vsel %vm608, %v601, %v605
  %v610 = vand.u32 2147483647, %v600
  %vm611 = vcmp.eq.f32.partialorder %v610, 8.507059e+37
  %v612 = vand.u32 %v600, 2147483648
  %v613 = vor.u32 1.1754944e-38, %v612
  %v614 = vsel %vm611, %v613, %v609
  %v615 = vmul.f32 1.0, %v614
  %v616 = vmul.f32 %v595, %v573
  %v617 = vadd.f32 %v553, %v616
  %v618 = vtanh.pop %v617
  %v619 = vsub.f32 1.0, %v615
  %v620 = vmul.f32 %v619, %v618
  %v621 = vmul.f32 %v615, %v539
  %v622 = vadd.f32 %v620, %v621
  %s623 = sadd.s32 %s29, 6
  %v624 = vstv %s623
  %vm625 = vcmp.eq.s32.totalorder %v28, %v624
  %v626 = vsel %vm625, 1, 0
  %v627 = vperm.slane %v626, 0
  %vm628 = vcmp.eq.s32.totalorder %v627, 1
  %v629 = vsel %vm628, %v622, %v546
  %s630 = scalar_lea.vmem %s1, 84
  %v631 = vld [vmem:[%s630] sm:$0xf]
  %v632 = vld [vmem:[%s630 + $0x4] sm:$0xf]
  %v633 = vld [vmem:[%s630 + $0x8] sm:$0xf]
  %v634 = vunpack.c.l.bf16 %v631
  %v635 = vunpack.c.l.bf16 %v632
  %v636 = vunpack.c.l.bf16 %v633
  %v637 = vpack.c.bf16 %v622, %v622
  %v639 = vsel %vm57, %v637, 0
  %641 = vmatpush.bf16.msra.mxu0 0
  %642 = vmatpush.bf16.msra.mxu0 0
  %643 = vmatpush.bf16.msra.mxu0 0
  %644 = vmatpush.bf16.msra.mxu0 0
  %645 = vmatpush.bf16.msra.mxu0 0
  %646 = vmatpush.bf16.msra.mxu0 0
  %647 = vmatpush.bf16.msra.mxu0 0
  %648 = vmatpush.bf16.msra.mxu0 %v639
  %649 = vmatmul.bf16.gmra.mxu0 %v52
  %v650 = vpop.f32.mrf.mxu0
  %v651 = vadd.f32 0.0, %v650
  %v652 = vpop.f32.mrf.mxu0
  %v653 = vadd.f32 0.0, %v652
  %654 = vmatmul.bf16.gmra.mxu0 %v55
  %v655 = vpop.f32.mrf.mxu0
  %v656 = vadd.f32 0.0, %v655
  %v657 = vpop.f32.mrf.mxu0
  %658 = vdwg.mxu0
  %v659 = vadd.f32 %v634, %v651
  %v660 = vxor.u32 %v659, 2147483648
  %v661 = vmul.f32 %v660, 1.442695
  %v662 = vpow.pop %v661
  %v663 = vadd.f32 %v662, 1.0
  %v664 = vrcp.pop %v663
  %v665 = vmul.f32 %v663, %v664
  %v666 = vsub.f32 1.0, %v665
  %v667 = vmul.f32 %v664, %v666
  %v668 = vadd.f32 %v664, %v667
  %vm669 = vweird.f32 %v663
  %vm670 = vweird.f32 %v664
  %vm671 = vmor %vm669, %vm670
  %v672 = vsel %vm671, %v664, %v668
  %v673 = vand.u32 2147483647, %v663
  %vm674 = vcmp.eq.f32.partialorder %v673, 8.507059e+37
  %v675 = vand.u32 %v663, 2147483648
  %v676 = vor.u32 1.1754944e-38, %v675
  %v677 = vsel %vm674, %v676, %v672
  %v678 = vmul.f32 1.0, %v677
  %v679 = vadd.f32 %v635, %v653
  %v680 = vxor.u32 %v679, 2147483648
  %v681 = vmul.f32 %v680, 1.442695
  %v682 = vpow.pop %v681
  %v683 = vadd.f32 %v682, 1.0
  %v684 = vrcp.pop %v683
  %v685 = vmul.f32 %v683, %v684
  %v686 = vsub.f32 1.0, %v685
  %v687 = vmul.f32 %v684, %v686
  %v688 = vadd.f32 %v684, %v687
  %vm689 = vweird.f32 %v683
  %vm690 = vweird.f32 %v684
  %vm691 = vmor %vm689, %vm690
  %v692 = vsel %vm691, %v684, %v688
  %v693 = vand.u32 2147483647, %v683
  %vm694 = vcmp.eq.f32.partialorder %v693, 8.507059e+37
  %v695 = vand.u32 %v683, 2147483648
  %v696 = vor.u32 1.1754944e-38, %v695
  %v697 = vsel %vm694, %v696, %v692
  %v698 = vmul.f32 1.0, %v697
  %v699 = vmul.f32 %v678, %v656
  %v700 = vadd.f32 %v636, %v699
  %v701 = vtanh.pop %v700
  %v702 = vsub.f32 1.0, %v698
  %v703 = vmul.f32 %v702, %v701
  %v704 = vmul.f32 %v698, %v622
  %v705 = vadd.f32 %v703, %v704
  %s706 = sadd.s32 %s29, 7
  %v707 = vstv %s706
  %vm708 = vcmp.eq.s32.totalorder %v28, %v707
  %v709 = vsel %vm708, 1, 0
  %v710 = vperm.slane %v709, 0
  %vm711 = vcmp.eq.s32.totalorder %v710, 1
  %v712 = vsel %vm711, %v705, %v629
  %713 = vst [vmem:[#allocation2] sm:$0xff] %v705
  %714 = vst [vmem:[#allocation3] sm:$0xff] %v712
  // Predicated region
  $region26: #{user_encoder_forward.1} parent=0 // pred_check
    %p715 = pneg %p21
  $region27: #{user_encoder_forward.1} parent=0 // pred_check_branch
    %717 = sbr.rel (%p715) target = $region29
  $region28: #{user_encoder_forward.1} parent=0 // pred_region
    %v718 = vld [vmem:[%s3] sm:$0xff]
    %v719 = vld [vmem:[%s3 + $0x8] sm:$0xff]
    %v720 = vld [vmem:[%s3 + $0x10] sm:$0xff]
    %v721 = vld [vmem:[%s3 + $0x18] sm:$0xff]
    %v722 = vld [vmem:[%s4] sm:$0xff]
    %v723 = vld [vmem:[%s4 + $0x8] sm:$0xff]
    %v724 = vld [vmem:[%s4 + $0x10] sm:$0xff]
    %v725 = vld [vmem:[%s4 + $0x18] sm:$0xff]
    %727 = vset.pattern.permute.xlu0 0
    %728 = vperm.xlu0 %727, %v722
    %v729 = vpop.permute.xlu0 %728
    %732 = vset.pattern.permute.xlu0 0
    %733 = vperm.xlu0 %732, %v723
    %v734 = vpop.permute.xlu0 %733
    %737 = vset.pattern.permute.xlu0 0
    %738 = vperm.xlu0 %737, %v724
    %v739 = vpop.permute.xlu0 %738
    %742 = vset.pattern.permute.xlu0 0
    %743 = vperm.xlu0 %742, %v725
    %v744 = vpop.permute.xlu0 %743
    %v747 = vsel %vm50, %v718, 0
    %v750 = vsel %vm50, %v719, 0
    %v753 = vsel %vm50, %v720, 0
    %v756 = vsel %vm50, %v721, 0
    %758 = vmatpush.msra.mxu0 0.0
    %759 = vmatpush.msra.mxu0 0.0
    %760 = vmatpush.msra.mxu0 0.0
    %761 = vmatpush.msra.mxu0 0.0
    %762 = vmatpush.msra.mxu0 0.0
    %763 = vmatpush.msra.mxu0 0.0
    %764 = vmatpush.msra.mxu0 0.0
    %765 = vmatpush.msra.mxu0 0.0
    %766 = vmatpush.msra.mxu0 0.0
    %767 = vmatpush.msra.mxu0 0.0
    %768 = vmatpush.msra.mxu0 0.0
    %769 = vmatpush.msra.mxu0 0.0
    %770 = vmatpush.msra.mxu0 0.0
    %771 = vmatpush.msra.mxu0 0.0
    %772 = vmatpush.msra.mxu0 0.0
    %773 = vmatpush.msra.mxu0 %v712
    %774 = vmatmul.f32.gmra.mxu0 %v747
    %v775 = vpop.f32.mrf.mxu0
    %v776 = vadd.f32 %v729, %v775
    %777 = vmatmul.f32.gmra.mxu0 %v750
    %v778 = vpop.f32.mrf.mxu0
    %v779 = vadd.f32 %v734, %v778
    %780 = vmatmul.f32.gmra.mxu0 %v753
    %v781 = vpop.f32.mrf.mxu0
    %v782 = vadd.f32 %v739, %v781
    %783 = vmatmul.f32.gmra.mxu0 %v756
    %v784 = vpop.f32.mrf.mxu0
    %v785 = vadd.f32 %v744, %v784
    %786 = vdwg.mxu0
    %787 = vst [vmem:[%s5] sm:$0xff] %v776
    %788 = vst [vmem:[%s5 + $0x8] sm:$0xff] %v779
    %789 = vst [vmem:[%s5 + $0x10] sm:$0xff] %v782
    %790 = vst [vmem:[%s5 + $0x18] sm:$0xff] %v785
  $region29: #{user_encoder_forward.1} parent=0 // pred_fallthru
    _
  // Predicated region
  $region30: #{user_encoder_forward.1} parent=0 // pred_check
    _
  $region31: #{user_encoder_forward.1} parent=0 // pred_check_branch
    %792 = sbr.rel (0) target = $region33
  $region32: #{user_encoder_forward.1} parent=0 // pred_region
    _
  $region33: #{user_encoder_forward.1} parent=0 // pred_fallthru
    _
  // Predicated region
  $region34: #{user_encoder_forward.1} parent=0 // pred_check
    _
  $region35: #{user_encoder_forward.1} parent=0 // pred_check_branch
    %794 = sbr.rel (0) target = $region37
  $region36: #{user_encoder_forward.1} parent=0 // pred_region
    _
  $region37: #{user_encoder_forward.1} parent=0 // pred_fallthru
    _

</llo_original>
